<compile_context>
chip_gen: v7x
topology: tpu7x:2x2x1
jax: 0.10.0
libtpu: 0.0.40
codegen_flags: <defaults>
</compile_context>

<pallas_src>
import jax
import jax.numpy as jnp
from jax.experimental import pallas as pl
from jax.experimental.pallas import tpu as pltpu

DIM = 2          # dim in the torch module
N_UP = 4         # n1
N_LOW = 4        # n2
LANE = 128


def _x_to_pq_perm(dim):
    """snn.x_to_pq assumed convention: out[j] = in[perm[j]] (even -> p, odd -> q)."""
    return list(range(0, 2 * dim, 2)) + list(range(1, 2 * dim, 2))


def _choose_tiling(B):
    """Pick (SB, TL): each feature row is processed as dense (SB, TL) slabs.

    - TL (lane width) is a multiple of 128; grows to 512 for larger B.
    - SB (sublanes) grows toward 64 (512 KiB block at TL=512) while keeping at
      least 2 grid steps so v7x's two TensorCores both get work.
    """
    TL = 512 if B >= 2 * 8 * 512 else LANE
    SB = 8
    while SB < 64 and B >= 2 * (2 * SB) * TL:
        SB *= 2
    return SB, TL


def _compose_linear(s_stack, bias, start_with_p):
    """Fold n alternating unit-triangular symplectic sublayers (p += q @ S_i or
    q += p @ S_i, S_i symmetric) plus the trailing bias into one affine map on
    row vectors [p | q]:  v_out = v_in @ M + c.  Tiny plain-JAX param prep."""
    F = 2 * DIM
    M = jnp.eye(F, dtype=jnp.float32)
    for i in range(s_stack.shape[0]):
        A = jnp.eye(F, dtype=jnp.float32)
        p_update = (i % 2 == 0) == start_with_p
        if p_update:
            A = A.at[DIM:, :DIM].set(s_stack[i])   # p' = p + q @ S
        else:
            A = A.at[:DIM, DIM:].set(s_stack[i])   # q' = q + p @ S
        M = M @ A                                   # row-vector composition
    return M, bias


def sympnet_kernel(m_up_ref, c_up_ref, a_up_ref,
                   m_low_ref, c_low_ref, a_low_ref,
                   x_ref, o_ref):
    """x_ref / o_ref: (2*DIM, SB, TL) blocks — each feature row is a dense
    (SB, TL) slab (batch on sublanes x lanes).  All parameters are flat f32
    arrays in SMEM read as scalars: pure scalar*vector VPU madds + EUP tanh,
    no MXU, no tiny VMEM DMAs."""
    F = 2 * DIM
    perm = _x_to_pq_perm(DIM)

    # snn.x_to_pq (input): de-interleave via static leading-axis indexing (free).
    v = [x_ref[perm[j]] for j in range(F)]

    def affine(vec, m_ref, c_ref):
        # out[d] = sum_k M[k, d] * vec[k] + c[d]   (m_ref holds M.T flattened)
        return [sum(m_ref[d * F + k] * vec[k] for k in range(F)) + c_ref[d]
                for d in range(F)]

    # ---- Linear 'up' (n1 alternating sublayers + bias), pre-composed ----
    v = affine(v, m_up_ref, c_up_ref)
    # ---- Activation 'up':  p += a * tanh(q)  (tanh -> EUP slot) ----
    for d in range(DIM):
        v[d] = v[d] + a_up_ref[d] * jnp.tanh(v[DIM + d])
    # ---- Linear 'low' (n2 alternating sublayers + bias), pre-composed ----
    v = affine(v, m_low_ref, c_low_ref)
    # ---- Activation 'low': q += a * tanh(p) ----
    for d in range(DIM):
        v[DIM + d] = v[DIM + d] + a_low_ref[d] * jnp.tanh(v[d])

    # snn.x_to_pq (output): the torch forward applies the forward shuffle again,
    # so the same perm is used.  Each store is a dense unmasked (SB, TL) write.
    for j in range(F):
        o_ref[j] = v[perm[j]]


def sympnet_forward(x, params):
    B, F = x.shape
    assert F == 2 * DIM
    SB, TL = _choose_tiling(B)
    tile_b = SB * TL
    n_tiles = -(-B // tile_b)
    B_pad = n_tiles * tile_b

    # Pre-compose the two Linear modules into single 4x4 affine maps (tiny).
    s_up = params["s_up"].reshape(N_UP, DIM, DIM)
    s_low = params["s_low"].reshape(N_LOW, DIM, DIM)
    m_up, c_up = _compose_linear(s_up, params["b_up"], start_with_p=True)
    m_low, c_low = _compose_linear(s_low, params["b_low"], start_with_p=False)

    # Lane-dense layout: one fused transpose+pad pass, then a free reshape so
    # each feature row is a stack of dense (SB, TL) slabs.
    x_t = jnp.pad(x.T, ((0, 0), (0, B_pad - B)))
    x_t = x_t.reshape(F, B_pad // TL, TL)

    smem = pl.BlockSpec(memory_space=pltpu.MemorySpace.SMEM)
    tile = pl.BlockSpec((F, SB, TL), lambda i: (0, i, 0))

    out_t = pl.pallas_call(
        sympnet_kernel,
        out_shape=jax.ShapeDtypeStruct((F, B_pad // TL, TL), x.dtype),
        grid=(n_tiles,),
        in_specs=[smem] * 6 + [tile],
        out_specs=tile,
        compiler_params=pltpu.CompilerParams(
            dimension_semantics=("parallel",),
            # double-buffered in+out footprint <= ~2 MiB; explicit limit is
            # just documented headroom (safe on v5e/v6e/v7x).
            vmem_limit_bytes=32 * 1024 * 1024),
    )(m_up.T.reshape(-1), c_up, params["a_up"],
      m_low.T.reshape(-1), c_low, params["a_low"],
      x_t)

    return out_t.reshape(F, B_pad)[:, :B].T


def init_params(key):
    k1, k2, k3, k4 = jax.random.split(key, 4)
    a_up_raw = 0.1 * jax.random.normal(k1, (N_UP, DIM, DIM), jnp.float32)
    a_low_raw = 0.1 * jax.random.normal(k2, (N_LOW, DIM, DIM), jnp.float32)
    # symplectic constraint: symmetric S = (A + A^T)/2  (param prep, plain JAX)
    s_up = 0.5 * (a_up_raw + jnp.swapaxes(a_up_raw, -1, -2))
    s_low = 0.5 * (a_low_raw + jnp.swapaxes(a_low_raw, -1, -2))
    return {
        # flattened 1-D so they sit compactly in SMEM (avoids 2-D SMEM padding)
        "s_up": s_up.reshape(-1),
        "b_up": jnp.ones((2 * DIM,), jnp.float32),      # b = torch.ones(2*dim)
        "a_up": 0.1 * jax.random.normal(k3, (DIM,), jnp.float32),
        "s_low": s_low.reshape(-1),
        "b_low": jnp.ones((2 * DIM,), jnp.float32),
        "a_low": 0.1 * jax.random.normal(k4, (DIM,), jnp.float32),
    }


def sympnet_reference(x, params):
    """Pure-jnp reference (explicit sublayer form) for the correctness check."""
    def x_to_pq(v):
        return jnp.concatenate([v[..., 0::2], v[..., 1::2]], axis=-1)

    pq = x_to_pq(x)
    p, q = pq[:, :DIM], pq[:, DIM:]
    s_up = params["s_up"].reshape(N_UP, DIM, DIM)
    s_low = params["s_low"].reshape(N_LOW, DIM, DIM)
    for i in range(N_UP):
        if i % 2 == 0:
            p = p + q @ s_up[i]
        else:
            q = q + p @ s_up[i]
    p = p + params["b_up"][:DIM]
    q = q + params["b_up"][DIM:]
    p = p + params["a_up"] * jnp.tanh(q)
    for i in range(N_LOW):
        if i % 2 == 0:
            q = q + p @ s_low[i]
        else:
            p = p + q @ s_low[i]
    p = p + params["b_low"][:DIM]
    q = q + params["b_low"][DIM:]
    q = q + params["a_low"] * jnp.tanh(p)
    return x_to_pq(jnp.concatenate([p, q], axis=-1))


if __name__ == "__main__":
    key = jax.random.PRNGKey(0)
    kx, kp = jax.random.split(key)
    params = init_params(kp)
    fwd = jax.jit(sympnet_forward)

    # Small single-tile case (B=8) and a multi-tile + padding case (B=1500,
    # 2 grid steps -> exercises the "parallel" axis / both v7x TCs).
    for B in (8, 1500):
        x = jax.random.normal(jax.random.fold_in(kx, B), (B, 2 * DIM), jnp.float32)
        nx = fwd(x, params)
        jax.block_until_ready(nx)
        assert nx.shape == (B, 2 * DIM) and nx.dtype == jnp.float32
        ref = sympnet_reference(x, params)
        assert jnp.allclose(nx, ref, atol=1e-5, rtol=1e-5), (
            f"mismatch at B={B}: max abs err "
            f"{float(jnp.max(jnp.abs(nx - ref)))}")

    print("KERNEL_OK")
</pallas_src>

<mosaic_0001>
module attributes {stable_mosaic.version = 11 : i64} {
  func.func @sympnet_kernel(%arg0: i32, %arg1: memref<16xf32, #tpu.memory_space<smem>>, %arg2: memref<4xf32, #tpu.memory_space<smem>>, %arg3: memref<2xf32, #tpu.memory_space<smem>>, %arg4: memref<16xf32, #tpu.memory_space<smem>>, %arg5: memref<4xf32, #tpu.memory_space<smem>>, %arg6: memref<2xf32, #tpu.memory_space<smem>>, %arg7: memref<4x8x128xf32, #tpu.memory_space<vmem>>, %arg8: memref<4x8x128xf32, #tpu.memory_space<vmem>>) attributes {dimension_semantics = [#tpu.dimension_semantics<parallel>], iteration_bounds = array<i64: 1>, scalar_prefetch = 0 : i64, scratch_operands = 0 : i64, tpu.core_type = #tpu.core_type<tc>, window_params = [{transform_indices = @transform_0, window_bounds = array<i64: 16>}, {transform_indices = @transform_1, window_bounds = array<i64: 4>}, {transform_indices = @transform_2, window_bounds = array<i64: 2>}, {transform_indices = @transform_3, window_bounds = array<i64: 16>}, {transform_indices = @transform_4, window_bounds = array<i64: 4>}, {transform_indices = @transform_5, window_bounds = array<i64: 2>}, {transform_indices = @transform_6, window_bounds = array<i64: 4, 8, 128>}, {transform_indices = @transform_7, window_bounds = array<i64: 4, 8, 128>}]} {
    %c0 = arith.constant 0 : index
    %c0_0 = arith.constant 0 : index
    %c0_1 = arith.constant 0 : index
    %0 = vector.load %arg7[%c0, %c0_0, %c0_1] : memref<4x8x128xf32, #tpu.memory_space<vmem>>, vector<1x8x128xf32>
    %1 = vector.shape_cast %0 : vector<1x8x128xf32> to vector<8x128xf32>
    %c2 = arith.constant 2 : index
    %c0_2 = arith.constant 0 : index
    %c0_3 = arith.constant 0 : index
    %2 = vector.load %arg7[%c2, %c0_2, %c0_3] : memref<4x8x128xf32, #tpu.memory_space<vmem>>, vector<1x8x128xf32>
    %3 = vector.shape_cast %2 : vector<1x8x128xf32> to vector<8x128xf32>
    %c1 = arith.constant 1 : index
    %c0_4 = arith.constant 0 : index
    %c0_5 = arith.constant 0 : index
    %4 = vector.load %arg7[%c1, %c0_4, %c0_5] : memref<4x8x128xf32, #tpu.memory_space<vmem>>, vector<1x8x128xf32>
    %5 = vector.shape_cast %4 : vector<1x8x128xf32> to vector<8x128xf32>
    %c3 = arith.constant 3 : index
    %c0_6 = arith.constant 0 : index
    %c0_7 = arith.constant 0 : index
    %6 = vector.load %arg7[%c3, %c0_6, %c0_7] : memref<4x8x128xf32, #tpu.memory_space<vmem>>, vector<1x8x128xf32>
    %7 = vector.shape_cast %6 : vector<1x8x128xf32> to vector<8x128xf32>
    %c0_8 = arith.constant 0 : index
    %8 = memref.load %arg1[%c0_8] : memref<16xf32, #tpu.memory_space<smem>>
    %9 = vector.broadcast %8 : f32 to vector<8x128xf32>
    %10 = arith.mulf %9, %1 : vector<8x128xf32>
    %cst = arith.constant 0.000000e+00 : f32
    %11 = vector.broadcast %cst : f32 to vector<8x128xf32>
    %12 = arith.addf %11, %10 : vector<8x128xf32>
    %c1_9 = arith.constant 1 : index
    %13 = memref.load %arg1[%c1_9] : memref<16xf32, #tpu.memory_space<smem>>
    %14 = vector.broadcast %13 : f32 to vector<8x128xf32>
    %15 = arith.mulf %14, %3 : vector<8x128xf32>
    %16 = arith.addf %12, %15 : vector<8x128xf32>
    %c2_10 = arith.constant 2 : index
    %17 = memref.load %arg1[%c2_10] : memref<16xf32, #tpu.memory_space<smem>>
    %18 = vector.broadcast %17 : f32 to vector<8x128xf32>
    %19 = arith.mulf %18, %5 : vector<8x128xf32>
    %20 = arith.addf %16, %19 : vector<8x128xf32>
    %c3_11 = arith.constant 3 : index
    %21 = memref.load %arg1[%c3_11] : memref<16xf32, #tpu.memory_space<smem>>
    %22 = vector.broadcast %21 : f32 to vector<8x128xf32>
    %23 = arith.mulf %22, %7 : vector<8x128xf32>
    %24 = arith.addf %20, %23 : vector<8x128xf32>
    %c0_12 = arith.constant 0 : index
    %25 = memref.load %arg2[%c0_12] : memref<4xf32, #tpu.memory_space<smem>>
    %26 = vector.broadcast %25 : f32 to vector<8x128xf32>
    %27 = arith.addf %24, %26 : vector<8x128xf32>
    %c4 = arith.constant 4 : index
    %28 = memref.load %arg1[%c4] : memref<16xf32, #tpu.memory_space<smem>>
    %29 = vector.broadcast %28 : f32 to vector<8x128xf32>
    %30 = arith.mulf %29, %1 : vector<8x128xf32>
    %cst_13 = arith.constant 0.000000e+00 : f32
    %31 = vector.broadcast %cst_13 : f32 to vector<8x128xf32>
    %32 = arith.addf %31, %30 : vector<8x128xf32>
    %c5 = arith.constant 5 : index
    %33 = memref.load %arg1[%c5] : memref<16xf32, #tpu.memory_space<smem>>
    %34 = vector.broadcast %33 : f32 to vector<8x128xf32>
    %35 = arith.mulf %34, %3 : vector<8x128xf32>
    %36 = arith.addf %32, %35 : vector<8x128xf32>
    %c6 = arith.constant 6 : index
    %37 = memref.load %arg1[%c6] : memref<16xf32, #tpu.memory_space<smem>>
    %38 = vector.broadcast %37 : f32 to vector<8x128xf32>
    %39 = arith.mulf %38, %5 : vector<8x128xf32>
    %40 = arith.addf %36, %39 : vector<8x128xf32>
    %c7 = arith.constant 7 : index
    %41 = memref.load %arg1[%c7] : memref<16xf32, #tpu.memory_space<smem>>
    %42 = vector.broadcast %41 : f32 to vector<8x128xf32>
    %43 = arith.mulf %42, %7 : vector<8x128xf32>
    %44 = arith.addf %40, %43 : vector<8x128xf32>
    %c1_14 = arith.constant 1 : index
    %45 = memref.load %arg2[%c1_14] : memref<4xf32, #tpu.memory_space<smem>>
    %46 = vector.broadcast %45 : f32 to vector<8x128xf32>
    %47 = arith.addf %44, %46 : vector<8x128xf32>
    %c8 = arith.constant 8 : index
    %48 = memref.load %arg1[%c8] : memref<16xf32, #tpu.memory_space<smem>>
    %49 = vector.broadcast %48 : f32 to vector<8x128xf32>
    %50 = arith.mulf %49, %1 : vector<8x128xf32>
    %cst_15 = arith.constant 0.000000e+00 : f32
    %51 = vector.broadcast %cst_15 : f32 to vector<8x128xf32>
    %52 = arith.addf %51, %50 : vector<8x128xf32>
    %c9 = arith.constant 9 : index
    %53 = memref.load %arg1[%c9] : memref<16xf32, #tpu.memory_space<smem>>
    %54 = vector.broadcast %53 : f32 to vector<8x128xf32>
    %55 = arith.mulf %54, %3 : vector<8x128xf32>
    %56 = arith.addf %52, %55 : vector<8x128xf32>
    %c10 = arith.constant 10 : index
    %57 = memref.load %arg1[%c10] : memref<16xf32, #tpu.memory_space<smem>>
    %58 = vector.broadcast %57 : f32 to vector<8x128xf32>
    %59 = arith.mulf %58, %5 : vector<8x128xf32>
    %60 = arith.addf %56, %59 : vector<8x128xf32>
    %c11 = arith.constant 11 : index
    %61 = memref.load %arg1[%c11] : memref<16xf32, #tpu.memory_space<smem>>
    %62 = vector.broadcast %61 : f32 to vector<8x128xf32>
    %63 = arith.mulf %62, %7 : vector<8x128xf32>
    %64 = arith.addf %60, %63 : vector<8x128xf32>
    %c2_16 = arith.constant 2 : index
    %65 = memref.load %arg2[%c2_16] : memref<4xf32, #tpu.memory_space<smem>>
    %66 = vector.broadcast %65 : f32 to vector<8x128xf32>
    %67 = arith.addf %64, %66 : vector<8x128xf32>
    %c12 = arith.constant 12 : index
    %68 = memref.load %arg1[%c12] : memref<16xf32, #tpu.memory_space<smem>>
    %69 = vector.broadcast %68 : f32 to vector<8x128xf32>
    %70 = arith.mulf %69, %1 : vector<8x128xf32>
    %cst_17 = arith.constant 0.000000e+00 : f32
    %71 = vector.broadcast %cst_17 : f32 to vector<8x128xf32>
    %72 = arith.addf %71, %70 : vector<8x128xf32>
    %c13 = arith.constant 13 : index
    %73 = memref.load %arg1[%c13] : memref<16xf32, #tpu.memory_space<smem>>
    %74 = vector.broadcast %73 : f32 to vector<8x128xf32>
    %75 = arith.mulf %74, %3 : vector<8x128xf32>
    %76 = arith.addf %72, %75 : vector<8x128xf32>
    %c14 = arith.constant 14 : index
    %77 = memref.load %arg1[%c14] : memref<16xf32, #tpu.memory_space<smem>>
    %78 = vector.broadcast %77 : f32 to vector<8x128xf32>
    %79 = arith.mulf %78, %5 : vector<8x128xf32>
    %80 = arith.addf %76, %79 : vector<8x128xf32>
    %c15 = arith.constant 15 : index
    %81 = memref.load %arg1[%c15] : memref<16xf32, #tpu.memory_space<smem>>
    %82 = vector.broadcast %81 : f32 to vector<8x128xf32>
    %83 = arith.mulf %82, %7 : vector<8x128xf32>
    %84 = arith.addf %80, %83 : vector<8x128xf32>
    %c3_18 = arith.constant 3 : index
    %85 = memref.load %arg2[%c3_18] : memref<4xf32, #tpu.memory_space<smem>>
    %86 = vector.broadcast %85 : f32 to vector<8x128xf32>
    %87 = arith.addf %84, %86 : vector<8x128xf32>
    %c0_19 = arith.constant 0 : index
    %88 = memref.load %arg3[%c0_19] : memref<2xf32, #tpu.memory_space<smem>>
    %89 = math.tanh %67 : vector<8x128xf32>
    %90 = vector.broadcast %88 : f32 to vector<8x128xf32>
    %91 = arith.mulf %90, %89 : vector<8x128xf32>
    %92 = arith.addf %27, %91 : vector<8x128xf32>
    %c1_20 = arith.constant 1 : index
    %93 = memref.load %arg3[%c1_20] : memref<2xf32, #tpu.memory_space<smem>>
    %94 = math.tanh %87 : vector<8x128xf32>
    %95 = vector.broadcast %93 : f32 to vector<8x128xf32>
    %96 = arith.mulf %95, %94 : vector<8x128xf32>
    %97 = arith.addf %47, %96 : vector<8x128xf32>
    %c0_21 = arith.constant 0 : index
    %98 = memref.load %arg4[%c0_21] : memref<16xf32, #tpu.memory_space<smem>>
    %99 = vector.broadcast %98 : f32 to vector<8x128xf32>
    %100 = arith.mulf %99, %92 : vector<8x128xf32>
    %cst_22 = arith.constant 0.000000e+00 : f32
    %101 = vector.broadcast %cst_22 : f32 to vector<8x128xf32>
    %102 = arith.addf %101, %100 : vector<8x128xf32>
    %c1_23 = arith.constant 1 : index
    %103 = memref.load %arg4[%c1_23] : memref<16xf32, #tpu.memory_space<smem>>
    %104 = vector.broadcast %103 : f32 to vector<8x128xf32>
    %105 = arith.mulf %104, %97 : vector<8x128xf32>
    %106 = arith.addf %102, %105 : vector<8x128xf32>
    %c2_24 = arith.constant 2 : index
    %107 = memref.load %arg4[%c2_24] : memref<16xf32, #tpu.memory_space<smem>>
    %108 = vector.broadcast %107 : f32 to vector<8x128xf32>
    %109 = arith.mulf %108, %67 : vector<8x128xf32>
    %110 = arith.addf %106, %109 : vector<8x128xf32>
    %c3_25 = arith.constant 3 : index
    %111 = memref.load %arg4[%c3_25] : memref<16xf32, #tpu.memory_space<smem>>
    %112 = vector.broadcast %111 : f32 to vector<8x128xf32>
    %113 = arith.mulf %112, %87 : vector<8x128xf32>
    %114 = arith.addf %110, %113 : vector<8x128xf32>
    %c0_26 = arith.constant 0 : index
    %115 = memref.load %arg5[%c0_26] : memref<4xf32, #tpu.memory_space<smem>>
    %116 = vector.broadcast %115 : f32 to vector<8x128xf32>
    %117 = arith.addf %114, %116 : vector<8x128xf32>
    %c4_27 = arith.constant 4 : index
    %118 = memref.load %arg4[%c4_27] : memref<16xf32, #tpu.memory_space<smem>>
    %119 = vector.broadcast %118 : f32 to vector<8x128xf32>
    %120 = arith.mulf %119, %92 : vector<8x128xf32>
    %cst_28 = arith.constant 0.000000e+00 : f32
    %121 = vector.broadcast %cst_28 : f32 to vector<8x128xf32>
    %122 = arith.addf %121, %120 : vector<8x128xf32>
    %c5_29 = arith.constant 5 : index
    %123 = memref.load %arg4[%c5_29] : memref<16xf32, #tpu.memory_space<smem>>
    %124 = vector.broadcast %123 : f32 to vector<8x128xf32>
    %125 = arith.mulf %124, %97 : vector<8x128xf32>
    %126 = arith.addf %122, %125 : vector<8x128xf32>
    %c6_30 = arith.constant 6 : index
    %127 = memref.load %arg4[%c6_30] : memref<16xf32, #tpu.memory_space<smem>>
    %128 = vector.broadcast %127 : f32 to vector<8x128xf32>
    %129 = arith.mulf %128, %67 : vector<8x128xf32>
    %130 = arith.addf %126, %129 : vector<8x128xf32>
    %c7_31 = arith.constant 7 : index
    %131 = memref.load %arg4[%c7_31] : memref<16xf32, #tpu.memory_space<smem>>
    %132 = vector.broadcast %131 : f32 to vector<8x128xf32>
    %133 = arith.mulf %132, %87 : vector<8x128xf32>
    %134 = arith.addf %130, %133 : vector<8x128xf32>
    %c1_32 = arith.constant 1 : index
    %135 = memref.load %arg5[%c1_32] : memref<4xf32, #tpu.memory_space<smem>>
    %136 = vector.broadcast %135 : f32 to vector<8x128xf32>
    %137 = arith.addf %134, %136 : vector<8x128xf32>
    %c8_33 = arith.constant 8 : index
    %138 = memref.load %arg4[%c8_33] : memref<16xf32, #tpu.memory_space<smem>>
    %139 = vector.broadcast %138 : f32 to vector<8x128xf32>
    %140 = arith.mulf %139, %92 : vector<8x128xf32>
    %cst_34 = arith.constant 0.000000e+00 : f32
    %141 = vector.broadcast %cst_34 : f32 to vector<8x128xf32>
    %142 = arith.addf %141, %140 : vector<8x128xf32>
    %c9_35 = arith.constant 9 : index
    %143 = memref.load %arg4[%c9_35] : memref<16xf32, #tpu.memory_space<smem>>
    %144 = vector.broadcast %143 : f32 to vector<8x128xf32>
    %145 = arith.mulf %144, %97 : vector<8x128xf32>
    %146 = arith.addf %142, %145 : vector<8x128xf32>
    %c10_36 = arith.constant 10 : index
    %147 = memref.load %arg4[%c10_36] : memref<16xf32, #tpu.memory_space<smem>>
    %148 = vector.broadcast %147 : f32 to vector<8x128xf32>
    %149 = arith.mulf %148, %67 : vector<8x128xf32>
    %150 = arith.addf %146, %149 : vector<8x128xf32>
    %c11_37 = arith.constant 11 : index
    %151 = memref.load %arg4[%c11_37] : memref<16xf32, #tpu.memory_space<smem>>
    %152 = vector.broadcast %151 : f32 to vector<8x128xf32>
    %153 = arith.mulf %152, %87 : vector<8x128xf32>
    %154 = arith.addf %150, %153 : vector<8x128xf32>
    %c2_38 = arith.constant 2 : index
    %155 = memref.load %arg5[%c2_38] : memref<4xf32, #tpu.memory_space<smem>>
    %156 = vector.broadcast %155 : f32 to vector<8x128xf32>
    %157 = arith.addf %154, %156 : vector<8x128xf32>
    %c12_39 = arith.constant 12 : index
    %158 = memref.load %arg4[%c12_39] : memref<16xf32, #tpu.memory_space<smem>>
    %159 = vector.broadcast %158 : f32 to vector<8x128xf32>
    %160 = arith.mulf %159, %92 : vector<8x128xf32>
    %cst_40 = arith.constant 0.000000e+00 : f32
    %161 = vector.broadcast %cst_40 : f32 to vector<8x128xf32>
    %162 = arith.addf %161, %160 : vector<8x128xf32>
    %c13_41 = arith.constant 13 : index
    %163 = memref.load %arg4[%c13_41] : memref<16xf32, #tpu.memory_space<smem>>
    %164 = vector.broadcast %163 : f32 to vector<8x128xf32>
    %165 = arith.mulf %164, %97 : vector<8x128xf32>
    %166 = arith.addf %162, %165 : vector<8x128xf32>
    %c14_42 = arith.constant 14 : index
    %167 = memref.load %arg4[%c14_42] : memref<16xf32, #tpu.memory_space<smem>>
    %168 = vector.broadcast %167 : f32 to vector<8x128xf32>
    %169 = arith.mulf %168, %67 : vector<8x128xf32>
    %170 = arith.addf %166, %169 : vector<8x128xf32>
    %c15_43 = arith.constant 15 : index
    %171 = memref.load %arg4[%c15_43] : memref<16xf32, #tpu.memory_space<smem>>
    %172 = vector.broadcast %171 : f32 to vector<8x128xf32>
    %173 = arith.mulf %172, %87 : vector<8x128xf32>
    %174 = arith.addf %170, %173 : vector<8x128xf32>
    %c3_44 = arith.constant 3 : index
    %175 = memref.load %arg5[%c3_44] : memref<4xf32, #tpu.memory_space<smem>>
    %176 = vector.broadcast %175 : f32 to vector<8x128xf32>
    %177 = arith.addf %174, %176 : vector<8x128xf32>
    %c0_45 = arith.constant 0 : index
    %178 = memref.load %arg6[%c0_45] : memref<2xf32, #tpu.memory_space<smem>>
    %179 = math.tanh %117 : vector<8x128xf32>
    %180 = vector.broadcast %178 : f32 to vector<8x128xf32>
    %181 = arith.mulf %180, %179 : vector<8x128xf32>
    %182 = arith.addf %157, %181 : vector<8x128xf32>
    %c1_46 = arith.constant 1 : index
    %183 = memref.load %arg6[%c1_46] : memref<2xf32, #tpu.memory_space<smem>>
    %184 = math.tanh %137 : vector<8x128xf32>
    %185 = vector.broadcast %183 : f32 to vector<8x128xf32>
    %186 = arith.mulf %185, %184 : vector<8x128xf32>
    %187 = arith.addf %177, %186 : vector<8x128xf32>
    %c0_47 = arith.constant 0 : index
    %c0_48 = arith.constant 0 : index
    %c0_49 = arith.constant 0 : index
    %188 = vector.load %arg8[%c0_47, %c0_48, %c0_49] : memref<4x8x128xf32, #tpu.memory_space<vmem>>, vector<1x8x128xf32>
    %189 = vector.shape_cast %188 : vector<1x8x128xf32> to vector<8x128xf32>
    %190 = vector.shape_cast %117 : vector<8x128xf32> to vector<1x8x128xf32>
    tpu.vector_store %arg8[%c0_47, %c0_48, %c0_49], %190 {strides = array<i32>} : memref<4x8x128xf32, #tpu.memory_space<vmem>>, vector<1x8x128xf32>,
    %c1_50 = arith.constant 1 : index
    %c0_51 = arith.constant 0 : index
    %c0_52 = arith.constant 0 : index
    %191 = vector.load %arg8[%c1_50, %c0_51, %c0_52] : memref<4x8x128xf32, #tpu.memory_space<vmem>>, vector<1x8x128xf32>
    %192 = vector.shape_cast %191 : vector<1x8x128xf32> to vector<8x128xf32>
    %193 = vector.shape_cast %182 : vector<8x128xf32> to vector<1x8x128xf32>
    tpu.vector_store %arg8[%c1_50, %c0_51, %c0_52], %193 {strides = array<i32>} : memref<4x8x128xf32, #tpu.memory_space<vmem>>, vector<1x8x128xf32>,
    %c2_53 = arith.constant 2 : index
    %c0_54 = arith.constant 0 : index
    %c0_55 = arith.constant 0 : index
    %194 = vector.load %arg8[%c2_53, %c0_54, %c0_55] : memref<4x8x128xf32, #tpu.memory_space<vmem>>, vector<1x8x128xf32>
    %195 = vector.shape_cast %194 : vector<1x8x128xf32> to vector<8x128xf32>
    %196 = vector.shape_cast %137 : vector<8x128xf32> to vector<1x8x128xf32>
    tpu.vector_store %arg8[%c2_53, %c0_54, %c0_55], %196 {strides = array<i32>} : memref<4x8x128xf32, #tpu.memory_space<vmem>>, vector<1x8x128xf32>,
    %c3_56 = arith.constant 3 : index
    %c0_57 = arith.constant 0 : index
    %c0_58 = arith.constant 0 : index
    %197 = vector.load %arg8[%c3_56, %c0_57, %c0_58] : memref<4x8x128xf32, #tpu.memory_space<vmem>>, vector<1x8x128xf32>
    %198 = vector.shape_cast %197 : vector<1x8x128xf32> to vector<8x128xf32>
    %199 = vector.shape_cast %187 : vector<8x128xf32> to vector<1x8x128xf32>
    tpu.vector_store %arg8[%c3_56, %c0_57, %c0_58], %199 {strides = array<i32>} : memref<4x8x128xf32, #tpu.memory_space<vmem>>, vector<1x8x128xf32>,
    return
  }
  func.func @transform_0(%arg0: i32) -> i32 {
    %c0_i32 = arith.constant 0 : i32
    %c0_i32_0 = arith.constant 0 : i32
    return %c0_i32 : i32
  }
  func.func @transform_1(%arg0: i32) -> i32 {
    %c0_i32 = arith.constant 0 : i32
    %c0_i32_0 = arith.constant 0 : i32
    return %c0_i32 : i32
  }
  func.func @transform_2(%arg0: i32) -> i32 {
    %c0_i32 = arith.constant 0 : i32
    %c0_i32_0 = arith.constant 0 : i32
    return %c0_i32 : i32
  }
  func.func @transform_3(%arg0: i32) -> i32 {
    %c0_i32 = arith.constant 0 : i32
    %c0_i32_0 = arith.constant 0 : i32
    return %c0_i32 : i32
  }
  func.func @transform_4(%arg0: i32) -> i32 {
    %c0_i32 = arith.constant 0 : i32
    %c0_i32_0 = arith.constant 0 : i32
    return %c0_i32 : i32
  }
  func.func @transform_5(%arg0: i32) -> i32 {
    %c0_i32 = arith.constant 0 : i32
    %c0_i32_0 = arith.constant 0 : i32
    return %c0_i32 : i32
  }
  func.func @transform_6(%arg0: i32) -> (i32, i32, i32) {
    %c0_i32 = arith.constant 0 : i32
    %c0_i32_0 = arith.constant 0 : i32
    %c0_i32_1 = arith.constant 0 : i32
    return %c0_i32, %arg0, %c0_i32_0 : i32, i32, i32
  }
  func.func @transform_7(%arg0: i32) -> (i32, i32, i32) {
    %c0_i32 = arith.constant 0 : i32
    %c0_i32_0 = arith.constant 0 : i32
    %c0_i32_1 = arith.constant 0 : i32
    return %c0_i32, %arg0, %c0_i32_0 : i32, i32, i32
  }
}

</mosaic_0001>

<llo_original>
// kernel: sympnet_forward.1
$region0: #{sympnet_forward.1}
  #allocation0 [shape = 'u32[]', space=smem, size = 0x4, offset = 0x4, fixed_abs, tag = 'smem constant byte address 0x4 - core index']
  #allocation1 [shape = 'u32[144,128]{1,0:T(1,128)}', space=vmem, size = 0x12000, scoped, tag = 'internal scratch']
  %s0 = inlined_call_operand.vmem [shape: f32[16], index: 0, kind: input, shape index: {}]
  %s1 = inlined_call_operand.vmem [shape: f32[4], index: 1, kind: input, shape index: {}]
  %s2 = inlined_call_operand.vmem [shape: f32[2], index: 2, kind: input, shape index: {}]
  %s3 = inlined_call_operand.vmem [shape: f32[16], index: 3, kind: input, shape index: {}]
  %s4 = inlined_call_operand.vmem [shape: f32[4], index: 4, kind: input, shape index: {}]
  %s5 = inlined_call_operand.vmem [shape: f32[2], index: 5, kind: input, shape index: {}]
  %s6 = inlined_call_operand.vmem [shape: f32[4,8,128], index: 6, kind: input, shape index: {}]
  %s7 = inlined_call_operand.vmem [shape: f32[4,8,128], index: 7, kind: output, shape index: {}]
  %s8 = sld [smem:[#allocation0]]
  $region62: #{sympnet_forward.1} parent=0
    _
  %s10 = ssub.s32 1, %s8
  %s11 = scalar_select 0, %s10, %s8
  $region1: #{sympnet_forward.1} parent=0
    #allocation2 [shape = 'u8[512]{0}', space=smem, size = 0x200, scoped, tag = 'input window, operand 0, single buffered']
    #allocation3 [shape = 's32[1]{0}', space=sflag, size = 0x4, scoped, tag = 'scoped memory for sympnet_forward.1']
    #allocation4 [shape = 'u8[512]{0}', space=smem, size = 0x200, scoped, tag = 'input window, operand 1, single buffered']
    #allocation5 [shape = 's32[1]{0}', space=sflag, size = 0x4, scoped, tag = 'scoped memory for sympnet_forward.1']
    #allocation6 [shape = 'u8[512]{0}', space=smem, size = 0x200, scoped, tag = 'input window, operand 2, single buffered']
    #allocation7 [shape = 'u8[512]{0}', space=smem, size = 0x200, scoped, tag = 'input window, operand 3, single buffered']
    #allocation8 [shape = 's32[1]{0}', space=sflag, size = 0x4, scoped, tag = 'scoped memory for sympnet_forward.1']
    #allocation9 [shape = 'u8[512]{0}', space=smem, size = 0x200, scoped, tag = 'input window, operand 4, single buffered']
    #allocation10 [shape = 'u8[512]{0}', space=smem, size = 0x200, scoped, tag = 'input window, operand 5, single buffered']
    #allocation11 [shape = 's32[1]{0}', space=sflag, size = 0x4, scoped, tag = 'scoped memory for sympnet_forward.1']
    %12 = vsyncpa [#allocation3], 0
    %13 = vsyncpa [#allocation5], 0
    %14 = vsyncpa [#allocation8], 0
    %15 = vsyncpa [#allocation11], 0
    // Predicated region
    $region2: #{sympnet_forward.1} parent=1 // pred_check
      _
    $region3: #{sympnet_forward.1} parent=1 // pred_check_branch
      %17 = sbr.rel (0) target = $region5
    $region4: #{sympnet_forward.1} parent=1 // pred_region
      %s19 = ssub.s32 16, 16
      %20 = vsyncadd [#allocation3], %s19
      %s22 = sshll.u32 %s0, 4
      %s23 = int_to_ptr.vmem [resolvable:$true] %s22
      %25 = dma.vmem_to_smem %s23, 16, [#allocation2], [#allocation3]
    $region5: #{sympnet_forward.1} parent=1 // pred_fallthru
      _
    // Predicated region
    $region6: #{sympnet_forward.1} parent=1 // pred_check
      _
    $region7: #{sympnet_forward.1} parent=1 // pred_check_branch
      %27 = sbr.rel (0) target = $region9
    $region8: #{sympnet_forward.1} parent=1 // pred_region
      %s29 = ssub.s32 16, 16
      %30 = vsyncadd [#allocation5], %s29
      %s32 = sshll.u32 %s1, 4
      %s33 = int_to_ptr.vmem [resolvable:$true] %s32
      %35 = dma.vmem_to_smem %s33, 16, [#allocation4], [#allocation5]
    $region9: #{sympnet_forward.1} parent=1 // pred_fallthru
      _
    // Predicated region
    $region10: #{sympnet_forward.1} parent=1 // pred_check
      _
    $region11: #{sympnet_forward.1} parent=1 // pred_check_branch
      %37 = sbr.rel (0) target = $region13
    $region12: #{sympnet_forward.1} parent=1 // pred_region
      %s39 = ssub.s32 16, 16
      %40 = vsyncadd [#allocation5], %s39
      %s42 = sshll.u32 %s2, 4
      %s43 = int_to_ptr.vmem [resolvable:$true] %s42
      %45 = dma.vmem_to_smem %s43, 16, [#allocation6], [#allocation5]
    $region13: #{sympnet_forward.1} parent=1 // pred_fallthru
      _
    // Predicated region
    $region14: #{sympnet_forward.1} parent=1 // pred_check
      _
    $region15: #{sympnet_forward.1} parent=1 // pred_check_branch
      %47 = sbr.rel (0) target = $region17
    $region16: #{sympnet_forward.1} parent=1 // pred_region
      %s49 = ssub.s32 16, 16
      %50 = vsyncadd [#allocation8], %s49
      %s52 = sshll.u32 %s3, 4
      %s53 = int_to_ptr.vmem [resolvable:$true] %s52
      %55 = dma.vmem_to_smem %s53, 16, [#allocation7], [#allocation8]
    $region17: #{sympnet_forward.1} parent=1 // pred_fallthru
      _
    // Predicated region
    $region18: #{sympnet_forward.1} parent=1 // pred_check
      _
    $region19: #{sympnet_forward.1} parent=1 // pred_check_branch
      %57 = sbr.rel (0) target = $region21
    $region20: #{sympnet_forward.1} parent=1 // pred_region
      %s59 = ssub.s32 16, 16
      %60 = vsyncadd [#allocation8], %s59
      %s62 = sshll.u32 %s4, 4
      %s63 = int_to_ptr.vmem [resolvable:$true] %s62
      %65 = dma.vmem_to_smem %s63, 16, [#allocation9], [#allocation8]
    $region21: #{sympnet_forward.1} parent=1 // pred_fallthru
      _
    // Predicated region
    $region22: #{sympnet_forward.1} parent=1 // pred_check
      _
    $region23: #{sympnet_forward.1} parent=1 // pred_check_branch
      %67 = sbr.rel (0) target = $region25
    $region24: #{sympnet_forward.1} parent=1 // pred_region
      %s69 = ssub.s32 16, 16
      %70 = vsyncadd [#allocation11], %s69
      %s72 = sshll.u32 %s5, 4
      %s73 = int_to_ptr.vmem [resolvable:$true] %s72
      %75 = dma.vmem_to_smem %s73, 16, [#allocation10], [#allocation11]
    $region25: #{sympnet_forward.1} parent=1 // pred_fallthru
      _
    // Predicated region
    $region26: #{sympnet_forward.1} parent=1 // pred_check
      _
    $region27: #{sympnet_forward.1} parent=1 // pred_check_branch
      %77 = sbr.rel (0) target = $region29
    $region28: #{sympnet_forward.1} parent=1 // pred_region
      _
    $region29: #{sympnet_forward.1} parent=1 // pred_fallthru
      _
    // Predicated region
    $region30: #{sympnet_forward.1} parent=1 // pred_check
      _
    $region31: #{sympnet_forward.1} parent=1 // pred_check_branch
      %79 = sbr.rel (0) target = $region33
    $region32: #{sympnet_forward.1} parent=1 // pred_region
      %80 = dma.done [#allocation3], 16
    $region33: #{sympnet_forward.1} parent=1 // pred_fallthru
      _
    // Predicated region
    $region34: #{sympnet_forward.1} parent=1 // pred_check
      _
    $region35: #{sympnet_forward.1} parent=1 // pred_check_branch
      %82 = sbr.rel (0) target = $region37
    $region36: #{sympnet_forward.1} parent=1 // pred_region
      %83 = dma.done [#allocation5], 16
    $region37: #{sympnet_forward.1} parent=1 // pred_fallthru
      _
    // Predicated region
    $region38: #{sympnet_forward.1} parent=1 // pred_check
      _
    $region39: #{sympnet_forward.1} parent=1 // pred_check_branch
      %85 = sbr.rel (0) target = $region41
    $region40: #{sympnet_forward.1} parent=1 // pred_region
      %86 = dma.done [#allocation5], 16
    $region41: #{sympnet_forward.1} parent=1 // pred_fallthru
      _
    // Predicated region
    $region42: #{sympnet_forward.1} parent=1 // pred_check
      _
    $region43: #{sympnet_forward.1} parent=1 // pred_check_branch
      %88 = sbr.rel (0) target = $region45
    $region44: #{sympnet_forward.1} parent=1 // pred_region
      %89 = dma.done [#allocation8], 16
    $region45: #{sympnet_forward.1} parent=1 // pred_fallthru
      _
    // Predicated region
    $region46: #{sympnet_forward.1} parent=1 // pred_check
      _
    $region47: #{sympnet_forward.1} parent=1 // pred_check_branch
      %91 = sbr.rel (0) target = $region49
    $region48: #{sympnet_forward.1} parent=1 // pred_region
      %92 = dma.done [#allocation8], 16
    $region49: #{sympnet_forward.1} parent=1 // pred_fallthru
      _
    // Predicated region
    $region50: #{sympnet_forward.1} parent=1 // pred_check
      _
    $region51: #{sympnet_forward.1} parent=1 // pred_check_branch
      %94 = sbr.rel (0) target = $region53
    $region52: #{sympnet_forward.1} parent=1 // pred_region
      %95 = dma.done [#allocation11], 16
    $region53: #{sympnet_forward.1} parent=1 // pred_fallthru
      _
    %96 = sfence
    %v97 = vld [vmem:[%s6] sm:$0xff]
    %s98 = scalar_lea.vmem %s6, 16
    %v99 = vld [vmem:[%s98] sm:$0xff]
    %s100 = scalar_lea.vmem %s6, 8
    %v101 = vld [vmem:[%s100] sm:$0xff]
    %s102 = scalar_lea.vmem %s6, 24
    %v103 = vld [vmem:[%s102] sm:$0xff]
    %s104 = sld [smem:[#allocation2]]
    %v105 = vstv %s104
    %v106 = vmul.f32 %v105, %v97
    %v107 = vadd.f32 %v106, 0.0
    %s108 = sld [smem:[#allocation2 + $0x1]]
    %v109 = vstv %s108
    %v110 = vmul.f32 %v109, %v99
    %v111 = vadd.f32 %v107, %v110
    %s112 = sld [smem:[#allocation2 + $0x2]]
    %v113 = vstv %s112
    %v114 = vmul.f32 %v113, %v101
    %v115 = vadd.f32 %v111, %v114
    %s116 = sld [smem:[#allocation2 + $0x3]]
    %v117 = vstv %s116
    %v118 = vmul.f32 %v117, %v103
    %v119 = vadd.f32 %v115, %v118
    %s120 = sld [smem:[#allocation4]]
    %v121 = vstv %s120
    %v122 = vadd.f32 %v119, %v121
    %s123 = sld [smem:[#allocation2 + $0x4]]
    %v124 = vstv %s123
    %v125 = vmul.f32 %v124, %v97
    %v126 = vadd.f32 %v125, 0.0
    %s127 = sld [smem:[#allocation2 + $0x5]]
    %v128 = vstv %s127
    %v129 = vmul.f32 %v128, %v99
    %v130 = vadd.f32 %v126, %v129
    %s131 = sld [smem:[#allocation2 + $0x6]]
    %v132 = vstv %s131
    %v133 = vmul.f32 %v132, %v101
    %v134 = vadd.f32 %v130, %v133
    %s135 = sld [smem:[#allocation2 + $0x7]]
    %v136 = vstv %s135
    %v137 = vmul.f32 %v136, %v103
    %v138 = vadd.f32 %v134, %v137
    %s139 = sld [smem:[#allocation4 + $0x1]]
    %v140 = vstv %s139
    %v141 = vadd.f32 %v138, %v140
    %s142 = sld [smem:[#allocation2 + $0x8]]
    %v143 = vstv %s142
    %v144 = vmul.f32 %v143, %v97
    %v145 = vadd.f32 %v144, 0.0
    %s146 = sld [smem:[#allocation2 + $0x9]]
    %v147 = vstv %s146
    %v148 = vmul.f32 %v147, %v99
    %v149 = vadd.f32 %v145, %v148
    %s150 = sld [smem:[#allocation2 + $0xa]]
    %v151 = vstv %s150
    %v152 = vmul.f32 %v151, %v101
    %v153 = vadd.f32 %v149, %v152
    %s154 = sld [smem:[#allocation2 + $0xb]]
    %v155 = vstv %s154
    %v156 = vmul.f32 %v155, %v103
    %v157 = vadd.f32 %v153, %v156
    %s158 = sld [smem:[#allocation4 + $0x2]]
    %v159 = vstv %s158
    %v160 = vadd.f32 %v157, %v159
    %s161 = sld [smem:[#allocation2 + $0xc]]
    %v162 = vstv %s161
    %v163 = vmul.f32 %v162, %v97
    %v164 = vadd.f32 %v163, 0.0
    %s165 = sld [smem:[#allocation2 + $0xd]]
    %v166 = vstv %s165
    %v167 = vmul.f32 %v166, %v99
    %v168 = vadd.f32 %v164, %v167
    %s169 = sld [smem:[#allocation2 + $0xe]]
    %v170 = vstv %s169
    %v171 = vmul.f32 %v170, %v101
    %v172 = vadd.f32 %v168, %v171
    %s173 = sld [smem:[#allocation2 + $0xf]]
    %v174 = vstv %s173
    %v175 = vmul.f32 %v174, %v103
    %v176 = vadd.f32 %v172, %v175
    %s177 = sld [smem:[#allocation4 + $0x3]]
    %v178 = vstv %s177
    %v179 = vadd.f32 %v176, %v178
    %s180 = sld [smem:[#allocation6]]
    %v181 = vtanh.pop %v160
    %v182 = vstv %s180
    %v183 = vmul.f32 %v182, %v181
    %v184 = vadd.f32 %v122, %v183
    %s185 = sld [smem:[#allocation6 + $0x1]]
    %v186 = vtanh.pop %v179
    %v187 = vstv %s185
    %v188 = vmul.f32 %v187, %v186
    %v189 = vadd.f32 %v141, %v188
    %s190 = sld [smem:[#allocation7]]
    %v191 = vstv %s190
    %v192 = vmul.f32 %v191, %v184
    %v193 = vadd.f32 %v192, 0.0
    %s194 = sld [smem:[#allocation7 + $0x1]]
    %v195 = vstv %s194
    %v196 = vmul.f32 %v195, %v189
    %v197 = vadd.f32 %v193, %v196
    %s198 = sld [smem:[#allocation7 + $0x2]]
    %v199 = vstv %s198
    %v200 = vmul.f32 %v199, %v160
    %v201 = vadd.f32 %v197, %v200
    %s202 = sld [smem:[#allocation7 + $0x3]]
    %v203 = vstv %s202
    %v204 = vmul.f32 %v203, %v179
    %v205 = vadd.f32 %v201, %v204
    %s206 = sld [smem:[#allocation9]]
    %v207 = vstv %s206
    %v208 = vadd.f32 %v205, %v207
    %s209 = sld [smem:[#allocation7 + $0x4]]
    %v210 = vstv %s209
    %v211 = vmul.f32 %v210, %v184
    %v212 = vadd.f32 %v211, 0.0
    %s213 = sld [smem:[#allocation7 + $0x5]]
    %v214 = vstv %s213
    %v215 = vmul.f32 %v214, %v189
    %v216 = vadd.f32 %v212, %v215
    %s217 = sld [smem:[#allocation7 + $0x6]]
    %v218 = vstv %s217
    %v219 = vmul.f32 %v218, %v160
    %v220 = vadd.f32 %v216, %v219
    %s221 = sld [smem:[#allocation7 + $0x7]]
    %v222 = vstv %s221
    %v223 = vmul.f32 %v222, %v179
    %v224 = vadd.f32 %v220, %v223
    %s225 = sld [smem:[#allocation9 + $0x1]]
    %v226 = vstv %s225
    %v227 = vadd.f32 %v224, %v226
    %s228 = sld [smem:[#allocation7 + $0x8]]
    %v229 = vstv %s228
    %v230 = vmul.f32 %v229, %v184
    %v231 = vadd.f32 %v230, 0.0
    %s232 = sld [smem:[#allocation7 + $0x9]]
    %v233 = vstv %s232
    %v234 = vmul.f32 %v233, %v189
    %v235 = vadd.f32 %v231, %v234
    %s236 = sld [smem:[#allocation7 + $0xa]]
    %v237 = vstv %s236
    %v238 = vmul.f32 %v237, %v160
    %v239 = vadd.f32 %v235, %v238
    %s240 = sld [smem:[#allocation7 + $0xb]]
    %v241 = vstv %s240
    %v242 = vmul.f32 %v241, %v179
    %v243 = vadd.f32 %v239, %v242
    %s244 = sld [smem:[#allocation9 + $0x2]]
    %v245 = vstv %s244
    %v246 = vadd.f32 %v243, %v245
    %s247 = sld [smem:[#allocation7 + $0xc]]
    %v248 = vstv %s247
    %v249 = vmul.f32 %v248, %v184
    %v250 = vadd.f32 %v249, 0.0
    %s251 = sld [smem:[#allocation7 + $0xd]]
    %v252 = vstv %s251
    %v253 = vmul.f32 %v252, %v189
    %v254 = vadd.f32 %v250, %v253
    %s255 = sld [smem:[#allocation7 + $0xe]]
    %v256 = vstv %s255
    %v257 = vmul.f32 %v256, %v160
    %v258 = vadd.f32 %v254, %v257
    %s259 = sld [smem:[#allocation7 + $0xf]]
    %v260 = vstv %s259
    %v261 = vmul.f32 %v260, %v179
    %v262 = vadd.f32 %v258, %v261
    %s263 = sld [smem:[#allocation9 + $0x3]]
    %v264 = vstv %s263
    %v265 = vadd.f32 %v262, %v264
    %s266 = sld [smem:[#allocation10]]
    %v267 = vtanh.pop %v208
    %v268 = vstv %s266
    %v269 = vmul.f32 %v268, %v267
    %v270 = vadd.f32 %v246, %v269
    %s271 = sld [smem:[#allocation10 + $0x1]]
    %v272 = vtanh.pop %v227
    %v273 = vstv %s271
    %v274 = vmul.f32 %v273, %v272
    %v275 = vadd.f32 %v265, %v274
    %276 = vst [vmem:[%s7] sm:$0xff] %v208
    %s277 = scalar_lea.vmem %s7, 8
    %278 = vst [vmem:[%s277] sm:$0xff] %v270
    %s279 = scalar_lea.vmem %s7, 16
    %280 = vst [vmem:[%s279] sm:$0xff] %v227
    %s281 = scalar_lea.vmem %s7, 24
    %282 = vst [vmem:[%s281] sm:$0xff] %v275
    // Predicated region
    $region54: #{sympnet_forward.1} parent=1 // pred_check
      _
    $region55: #{sympnet_forward.1} parent=1 // pred_check_branch
      %284 = sbr.rel (0) target = $region57
    $region56: #{sympnet_forward.1} parent=1 // pred_region
      _
    $region57: #{sympnet_forward.1} parent=1 // pred_fallthru
      _
    // Predicated region
    $region58: #{sympnet_forward.1} parent=1 // pred_check
      _
    $region59: #{sympnet_forward.1} parent=1 // pred_check_branch
      %286 = sbr.rel (0) target = $region61
    $region60: #{sympnet_forward.1} parent=1 // pred_region
      _
    $region61: #{sympnet_forward.1} parent=1 // pred_fallthru
      _
    %287 = vsyncpa [#allocation3], 1
    %288 = vsyncpa [#allocation5], 1
    %289 = vsyncpa [#allocation8], 1
    %290 = vsyncpa [#allocation11], 1

</llo_original>
